<compile_context>
chip_gen: v7x
topology: tpu7x:2x2x1
jax: 0.10.0
libtpu: 0.0.40
codegen_flags: <defaults>
</compile_context>

<pallas_src>
import functools

import jax
import jax.numpy as jnp
from jax import lax
from jax.experimental import pallas as pl
from jax.experimental.pallas import tpu as pltpu

# `tau` is a free global in the original PyTorch forward(); the hard forward
# value is invariant to tau>0 (monotone transform), so it only matters for
# gradients (not computed here).
TAU = 1.0


def _round_up(v, m):
    return ((v + m - 1) // m) * m


def _discriminator_kernel(x_ref, g_ref, p_ref, o_ref, *, f, hdim, ndom,
                          o_w1, o_b1, o_w2, o_b2, o_w3, o_b3):
    x = x_ref[...]                         # (TB, F)
    g = g_ref[...]                         # (TB, ndom) gumbel noise

    p = p_ref[...]                         # packed params (tiny, resident)
    w1 = p[o_w1:o_w1 + f,    :hdim]
    b1 = p[o_b1:o_b1 + 1,    :hdim]
    w2 = p[o_w2:o_w2 + hdim, :hdim]
    b2 = p[o_b2:o_b2 + 1,    :hdim]
    w3 = p[o_w3:o_w3 + hdim, :ndom]
    b3 = p[o_b3:o_b3 + 1,    :ndom]

    # Linear 1 + LeakyReLU(0.01)
    h = jnp.dot(x, w1, preferred_element_type=jnp.float32) + b1
    h = jnp.where(h > 0, h, 0.01 * h)

    # Linear 2 + LeakyReLU(0.01)
    h = jnp.dot(h, w2, preferred_element_type=jnp.float32) + b2
    h = jnp.where(h > 0, h, 0.01 * h)

    # Linear 3 -> logits  (TB, ndomain)
    logits = jnp.dot(h, w3, preferred_element_type=jnp.float32) + b3

    # Hard gumbel-softmax forward value: one-hot(argmax(logits + g)).
    # (softmax and /tau are monotone -> argmax unchanged; no exp/sum needed)
    y = logits + g
    idx = jnp.argmax(y, axis=-1, keepdims=True)                  # (TB, 1)
    col = lax.broadcasted_iota(jnp.int32, y.shape, dimension=1)  # (TB, ndom)
    o_ref[...] = (col == idx).astype(o_ref.dtype)


def _pack_params(params):
    """Pack (w1,b1,w2,b2,w3,b3) into one 8-row-aligned [rows, width] block."""
    w1, b1, w2, b2, w3, b3 = params
    f, hdim = w1.shape
    ndom = w3.shape[1]
    width = max(hdim, ndom)

    segs = [("w1", f), ("b1", 1), ("w2", hdim), ("b2", 1), ("w3", hdim), ("b3", 1)]
    offs, rows = {}, 0
    for name, r in segs:
        offs[name] = rows
        rows += _round_up(r, 8)          # every segment starts sublane-aligned

    packed = jnp.zeros((rows, width), jnp.float32)
    packed = packed.at[offs["w1"]:offs["w1"] + f,    :hdim].set(w1.astype(jnp.float32))
    packed = packed.at[offs["b1"],                   :hdim].set(b1.astype(jnp.float32))
    packed = packed.at[offs["w2"]:offs["w2"] + hdim, :hdim].set(w2.astype(jnp.float32))
    packed = packed.at[offs["b2"],                   :hdim].set(b2.astype(jnp.float32))
    packed = packed.at[offs["w3"]:offs["w3"] + hdim, :ndom].set(w3.astype(jnp.float32))
    packed = packed.at[offs["b3"],                   :ndom].set(b3.astype(jnp.float32))
    return packed, offs


def discriminator_forward(x, params, gumbel_noise, *, tau=TAU, block_rows=None):
    """x: (N, F) float32, gumbel_noise: (N, ndomain) float32.

    Returns the hard one-hot (N, ndomain) float32 (torch hard gumbel-softmax
    forward value).  `tau` is accepted for API parity; the hard forward value
    does not depend on it.
    """
    del tau  # forward value is tau-invariant (monotone transform)
    w1, b1, w2, b2, w3, b3 = params
    n, f = x.shape
    hdim = w1.shape[1]
    ndom = w3.shape[1]

    x = x.astype(jnp.float32)
    gumbel_noise = gumbel_noise.astype(jnp.float32)

    # Tile selection: big row tiles (amortize the ~0.35 us per-step overhead),
    # capped at 8192 rows, but aim for >=4 grid steps when the batch is large
    # so v7x megacore gets >=2 pipelined steps per TensorCore.
    if block_rows is None:
        target = max(8, _round_up(pl.cdiv(n, 4), 8))
        block_rows = min(8192, target)
    block_rows = max(8, _round_up(block_rows, 8))

    # Ragged last block is handled by Pallas (no wrapper-side pad): the
    # out-of-range rows of the final input block are unspecified and the
    # corresponding output rows are dropped on writeback.  Rows are
    # independent, so that is safe.
    grid = (pl.cdiv(n, block_rows),)

    packed, offs = _pack_params(params)

    kernel = functools.partial(
        _discriminator_kernel, f=f, hdim=hdim, ndom=ndom,
        o_w1=offs["w1"], o_b1=offs["b1"], o_w2=offs["w2"],
        o_b2=offs["b2"], o_w3=offs["w3"], o_b3=offs["b3"])

    flops = 2 * n * (f * hdim + hdim * hdim + hdim * ndom)
    bytes_accessed = 4 * (n * f + 2 * n * ndom + packed.size)

    # VMEM budget: x / gumbel / out tiles each lane-pad to 128 lanes (f32) and
    # are double-buffered -> 3 * 128 * 4 * 2 = 3 KiB per tile row, plus the
    # resident param block and some compiler scratch headroom.
    per_row_bytes = 3 * 128 * 4 * 2
    param_bytes = packed.shape[0] * _round_up(packed.shape[1], 128) * 4 * 2
    vmem_budget = block_rows * per_row_bytes + param_bytes + (4 << 20)
    vmem_limit = int(min(max(32 << 20, vmem_budget), 56 << 20))

    out = pl.pallas_call(
        kernel,
        out_shape=jax.ShapeDtypeStruct((n, ndom), jnp.float32),
        grid_spec=pltpu.PrefetchScalarGridSpec(
            num_scalar_prefetch=0,
            grid=grid,
            in_specs=[
                pl.BlockSpec((block_rows, f), lambda i: (i, 0)),     # x tile
                pl.BlockSpec((block_rows, ndom), lambda i: (i, 0)),  # gumbel tile
                pl.BlockSpec(packed.shape, lambda i: (0, 0)),        # packed params
            ],
            out_specs=pl.BlockSpec((block_rows, ndom), lambda i: (i, 0)),
        ),
        compiler_params=pltpu.CompilerParams(
            dimension_semantics=("parallel",),   # v7x: rows shard across both TCs
            vmem_limit_bytes=vmem_limit,
        ),
        cost_estimate=pl.CostEstimate(
            flops=flops, transcendentals=0, bytes_accessed=bytes_accessed),
    )(x, gumbel_noise, packed)

    return out


def init_params(key, local_nfeatures, ndomain, hidden_dim=16):
    """Deterministic synthetic init (uniform, roughly matching torch fan-in scale)."""
    ks = jax.random.split(key, 6)

    def lin(kw, kb, fan_in, fan_out):
        bound = 1.0 / jnp.sqrt(fan_in)
        w = jax.random.uniform(kw, (fan_in, fan_out), jnp.float32, -bound, bound)
        b = jax.random.uniform(kb, (fan_out,), jnp.float32, -bound, bound)
        return w, b

    w1, b1 = lin(ks[0], ks[1], local_nfeatures, hidden_dim)
    w2, b2 = lin(ks[2], ks[3], hidden_dim, hidden_dim)
    w3, b3 = lin(ks[4], ks[5], hidden_dim, ndomain)
    return (w1, b1, w2, b2, w3, b3)


if __name__ == "__main__":
    # Small shapes implied by the module: batch=8, local_nfeatures=32, ndomain=4.
    N, LOCAL_NFEATURES, NDOMAIN = 8, 32, 4

    root = jax.random.PRNGKey(0)
    k_x, k_p, k_g = jax.random.split(root, 3)

    x = jax.random.normal(k_x, (N, LOCAL_NFEATURES), jnp.float32)
    params = init_params(k_p, LOCAL_NFEATURES, NDOMAIN)

    # Gumbel(0,1) noise, same distribution as torch's -exponential_().log()
    # TODO(synk): noise is sampled in the JAX wrapper to stand in for torch's
    # RNG-based F.gumbel_softmax; the kernel consumes it as an input.
    u = jax.random.uniform(k_g, (N, NDOMAIN), jnp.float32,
                           minval=1e-20, maxval=1.0)
    gumbel_noise = -jnp.log(-jnp.log(u))

    out = discriminator_forward(x, params, gumbel_noise, tau=TAU)
    out = jax.block_until_ready(out)

    assert out.shape == (N, NDOMAIN)
    # each row of the hard gumbel-softmax output is one-hot
    assert bool(jnp.all(jnp.sum(out, axis=-1) == 1.0))
    assert bool(jnp.all((out == 0.0) | (out == 1.0)))

    # cross-check against a pure-JAX reference of the same forward
    def ref_forward(x, params, g):
        w1, b1, w2, b2, w3, b3 = params
        h = x @ w1 + b1
        h = jnp.where(h > 0, h, 0.01 * h)
        h = h @ w2 + b2
        h = jnp.where(h > 0, h, 0.01 * h)
        logits = h @ w3 + b3
        idx = jnp.argmax((logits + g) / TAU, axis=-1)
        return jax.nn.one_hot(idx, logits.shape[-1], dtype=jnp.float32)

    ref = ref_forward(x, params, gumbel_noise)
    assert bool(jnp.all(out == ref))
    print("KERNEL_OK")
</pallas_src>

<mosaic_0001>
module attributes {stable_mosaic.version = 11 : i64} {
  func.func @_discriminator_kernel(%arg0: i32, %arg1: memref<8x32xf32, #tpu.memory_space<vmem>>, %arg2: memref<8x4xf32, #tpu.memory_space<vmem>>, %arg3: memref<88x16xf32, #tpu.memory_space<vmem>>, %arg4: memref<8x4xf32, #tpu.memory_space<vmem>>) attributes {dimension_semantics = [#tpu.dimension_semantics<parallel>], iteration_bounds = array<i64: 1>, scalar_prefetch = 0 : i64, scratch_operands = 0 : i64, tpu.core_type = #tpu.core_type<tc>, window_params = [{transform_indices = @transform_0, window_bounds = array<i64: 8, 32>}, {transform_indices = @transform_1, window_bounds = array<i64: 8, 4>}, {pipeline_mode = #tpu.pipeline_mode<synchronous>, transform_indices = @transform_2, window_bounds = array<i64: 88, 16>}, {transform_indices = @transform_3, window_bounds = array<i64: 8, 4>}]} {
    %c0 = arith.constant 0 : index
    %c0_0 = arith.constant 0 : index
    %0 = vector.load %arg1[%c0, %c0_0] : memref<8x32xf32, #tpu.memory_space<vmem>>, vector<8x32xf32>
    %c0_1 = arith.constant 0 : index
    %c0_2 = arith.constant 0 : index
    %1 = vector.load %arg2[%c0_1, %c0_2] : memref<8x4xf32, #tpu.memory_space<vmem>>, vector<8x4xf32>
    %c0_3 = arith.constant 0 : index
    %c0_4 = arith.constant 0 : index
    %2 = vector.load %arg3[%c0_3, %c0_4] : memref<88x16xf32, #tpu.memory_space<vmem>>, vector<88x16xf32>
    %3 = vector.extract_strided_slice %2 {offsets = [0, 0], sizes = [32, 16], strides = [1, 1]} : vector<88x16xf32> to vector<32x16xf32>
    %4 = vector.extract_strided_slice %2 {offsets = [32, 0], sizes = [1, 16], strides = [1, 1]} : vector<88x16xf32> to vector<1x16xf32>
    %5 = vector.extract_strided_slice %2 {offsets = [40, 0], sizes = [16, 16], strides = [1, 1]} : vector<88x16xf32> to vector<16x16xf32>
    %6 = vector.extract_strided_slice %2 {offsets = [56, 0], sizes = [1, 16], strides = [1, 1]} : vector<88x16xf32> to vector<1x16xf32>
    %7 = vector.extract_strided_slice %2 {offsets = [64, 0], sizes = [16, 4], strides = [1, 1]} : vector<88x16xf32> to vector<16x4xf32>
    %8 = vector.extract_strided_slice %2 {offsets = [80, 0], sizes = [1, 4], strides = [1, 1]} : vector<88x16xf32> to vector<1x4xf32>
    %cst = arith.constant dense<0.000000e+00> : vector<8x16xf32>
    %9 = tpu.matmul %0, %3, %cst {dimension_numbers = #tpu.dot_dimension_numbers<[1], [0], [0], [1], [0, 0, 1, 1], [], []>} : vector<8x32xf32>, vector<32x16xf32>, vector<8x16xf32> -> vector<8x16xf32>
    %10 = vector.broadcast %4 : vector<1x16xf32> to vector<8x16xf32>
    %11 = arith.addf %9, %10 : vector<8x16xf32>
    %cst_5 = arith.constant 0.000000e+00 : f32
    %12 = vector.broadcast %cst_5 : f32 to vector<8x16xf32>
    %13 = arith.cmpf ogt, %11, %12 : vector<8x16xf32>
    %cst_6 = arith.constant 0.00999999977 : f32
    %14 = vector.broadcast %cst_6 : f32 to vector<8x16xf32>
    %15 = arith.mulf %14, %11 : vector<8x16xf32>
    %16 = arith.select %13, %11, %15 : vector<8x16xi1>, vector<8x16xf32>
    %cst_7 = arith.constant dense<0.000000e+00> : vector<8x16xf32>
    %17 = tpu.matmul %16, %5, %cst_7 {dimension_numbers = #tpu.dot_dimension_numbers<[1], [0], [0], [1], [0, 0, 1, 1], [], []>} : vector<8x16xf32>, vector<16x16xf32>, vector<8x16xf32> -> vector<8x16xf32>
    %18 = vector.broadcast %6 : vector<1x16xf32> to vector<8x16xf32>
    %19 = arith.addf %17, %18 : vector<8x16xf32>
    %cst_8 = arith.constant 0.000000e+00 : f32
    %20 = vector.broadcast %cst_8 : f32 to vector<8x16xf32>
    %21 = arith.cmpf ogt, %19, %20 : vector<8x16xf32>
    %cst_9 = arith.constant 0.00999999977 : f32
    %22 = vector.broadcast %cst_9 : f32 to vector<8x16xf32>
    %23 = arith.mulf %22, %19 : vector<8x16xf32>
    %24 = arith.select %21, %19, %23 : vector<8x16xi1>, vector<8x16xf32>
    %cst_10 = arith.constant dense<0.000000e+00> : vector<8x4xf32>
    %25 = tpu.matmul %24, %7, %cst_10 {dimension_numbers = #tpu.dot_dimension_numbers<[1], [0], [0], [1], [0, 0, 1, 1], [], []>} : vector<8x16xf32>, vector<16x4xf32>, vector<8x4xf32> -> vector<8x4xf32>
    %26 = vector.broadcast %8 : vector<1x4xf32> to vector<8x4xf32>
    %27 = arith.addf %25, %26 : vector<8x4xf32>
    %28 = arith.addf %27, %1 : vector<8x4xf32>
    %29 = tpu.reduce_index %28 {axis = 1 : i32, kind = #tpu.reduction_kind<arg_max>} : vector<8x4xf32> -> vector<8xi32>
    %30 = vector.shape_cast %29 : vector<8xi32> to vector<8x1xi32>
    %31 = tpu.iota {dimensions = array<i32: 1>} : vector<8x4xi32>
    %32 = vector.broadcast %30 : vector<8x1xi32> to vector<8x4xi32>
    %33 = arith.cmpi eq, %31, %32 : vector<8x4xi32>
    %34 = arith.extui %33 : vector<8x4xi1> to vector<8x4xi32>
    %35 = arith.sitofp %34 : vector<8x4xi32> to vector<8x4xf32>
    %c0_11 = arith.constant 0 : index
    %c0_12 = arith.constant 0 : index
    %36 = vector.load %arg4[%c0_11, %c0_12] : memref<8x4xf32, #tpu.memory_space<vmem>>, vector<8x4xf32>
    tpu.vector_store %arg4[%c0_11, %c0_12], %35 {strides = array<i32>} : memref<8x4xf32, #tpu.memory_space<vmem>>, vector<8x4xf32>,
    return
  }
  func.func @transform_0(%arg0: i32) -> (i32, i32) {
    %c0_i32 = arith.constant 0 : i32
    %c0_i32_0 = arith.constant 0 : i32
    return %arg0, %c0_i32 : i32, i32
  }
  func.func @transform_1(%arg0: i32) -> (i32, i32) {
    %c0_i32 = arith.constant 0 : i32
    %c0_i32_0 = arith.constant 0 : i32
    return %arg0, %c0_i32 : i32, i32
  }
  func.func @transform_2(%arg0: i32) -> (i32, i32) {
    %c0_i32 = arith.constant 0 : i32
    %c0_i32_0 = arith.constant 0 : i32
    %c0_i32_1 = arith.constant 0 : i32
    return %c0_i32, %c0_i32_0 : i32, i32
  }
  func.func @transform_3(%arg0: i32) -> (i32, i32) {
    %c0_i32 = arith.constant 0 : i32
    %c0_i32_0 = arith.constant 0 : i32
    return %arg0, %c0_i32 : i32, i32
  }
}

</mosaic_0001>

<llo_original>
// kernel: tpu_custom_call.1
$region0: #{tpu_custom_call.1}
  #allocation0 [shape = 'u32[]', space=smem, size = 0x4, offset = 0x4, fixed_abs, tag = 'smem constant byte address 0x4 - core index']
  #allocation1 [shape = 'u32[144,128]{1,0:T(1,128)}', space=vmem, size = 0x12000, scoped, tag = 'internal scratch']
  %s0 = inlined_call_operand.vmem [shape: f32[8,32], index: 0, kind: input, shape index: {}]
  %s1 = inlined_call_operand.vmem [shape: f32[8,4], index: 1, kind: input, shape index: {}]
  %s2 = inlined_call_operand.vmem [shape: f32[88,16], index: 2, kind: input, shape index: {}]
  %s3 = inlined_call_operand.vmem [shape: f32[8,4], index: 3, kind: output, shape index: {}]
  %s4 = sld [smem:[#allocation0]]
  $region22: #{tpu_custom_call.1} parent=0
    _
  %s6 = ssub.s32 1, %s4
  %s7 = scalar_select 0, %s6, %s4
  // Predicated region
  $region2: #{tpu_custom_call.1} parent=0 // pred_check
    _
  $region3: #{tpu_custom_call.1} parent=0 // pred_check_branch
    %9 = sbr.rel (0) target = $region5
  $region4: #{tpu_custom_call.1} parent=0 // pred_region
    _
  $region5: #{tpu_custom_call.1} parent=0 // pred_fallthru
    _
  // Predicated region
  $region6: #{tpu_custom_call.1} parent=0 // pred_check
    _
  $region7: #{tpu_custom_call.1} parent=0 // pred_check_branch
    %11 = sbr.rel (0) target = $region9
  $region8: #{tpu_custom_call.1} parent=0 // pred_region
    _
  $region9: #{tpu_custom_call.1} parent=0 // pred_fallthru
    _
  // Predicated region
  $region10: #{tpu_custom_call.1} parent=0 // pred_check
    _
  $region11: #{tpu_custom_call.1} parent=0 // pred_check_branch
    %13 = sbr.rel (0) target = $region13
  $region12: #{tpu_custom_call.1} parent=0 // pred_region
    _
  $region13: #{tpu_custom_call.1} parent=0 // pred_fallthru
    _
  %v14 = vld [vmem:[%s0] sm:$0xff]
  %v15 = vld [vmem:[%s1] sm:$0xff]
  %v16 = vld [vmem:[%s2] sm:$0xff]
  %v17 = vld [vmem:[%s2 + $0x8] sm:$0xff]
  %v18 = vld [vmem:[%s2 + $0x10] sm:$0xff]
  %v19 = vld [vmem:[%s2 + $0x18] sm:$0xff]
  %v20 = vld [vmem:[%s2 + $0x20] sm:$0xff]
  %v21 = vld [vmem:[%s2 + $0x28] sm:$0xff]
  %v22 = vld [vmem:[%s2 + $0x30] sm:$0xff]
  %v23 = vld [vmem:[%s2 + $0x38] sm:$0xff]
  %v24 = vld [vmem:[%s2 + $0x40] sm:$0xff]
  %v25 = vld [vmem:[%s2 + $0x48] sm:$0xff]
  %v26 = vld [vmem:[%s2 + $0x50] sm:$0xff]
  %v27 = vlaneseq
  %v28 = vshrl.u32 %v27, 7
  %v29 = vsub.s32 0, %v28
  %v30 = vrot.slane %v20, %v29
  %vm31 = vcmask 261120
  %v33 = vsel %vm31, %v14, 0
  %35 = vmatprep.subr.mxu0 0.0
  %36 = vmatpush1.msra.mxu0 %v16
  %37 = vmatprep.subr.mxu0 0.0
  %38 = vmatpush1.msra.mxu0 %v17
  %39 = vmatprep.subr.mxu0 0.0
  %40 = vmatpush1.msra.mxu0 %v18
  %41 = vmatprep.subr.mxu0 0.0
  %42 = vmatpush1.msra.mxu0 %v19
  %43 = vmatprep.subr.mxu0 0.0
  %44 = vmatpush1.msra.mxu0 0.0
  %45 = vmatprep.subr.mxu0 0.0
  %46 = vmatpush1.msra.mxu0 0.0
  %47 = vmatprep.subr.mxu0 0.0
  %48 = vmatpush1.msra.mxu0 0.0
  %49 = vmatprep.subr.mxu0 0.0
  %50 = vmatpush1.msra.mxu0 0.0
  %51 = vmatprep.subr.mxu0 0.0
  %52 = vmatpush1.msra.mxu0 0.0
  %53 = vmatprep.subr.mxu0 0.0
  %54 = vmatpush1.msra.mxu0 0.0
  %55 = vmatprep.subr.mxu0 0.0
  %56 = vmatpush1.msra.mxu0 0.0
  %57 = vmatprep.subr.mxu0 0.0
  %58 = vmatpush1.msra.mxu0 0.0
  %59 = vmatprep.subr.mxu0 0.0
  %60 = vmatpush1.msra.mxu0 0.0
  %61 = vmatprep.subr.mxu0 0.0
  %62 = vmatpush1.msra.mxu0 0.0
  %63 = vmatprep.subr.mxu0 0.0
  %64 = vmatpush1.msra.mxu0 0.0
  %65 = vmatprep.subr.mxu0 0.0
  %66 = vmatpush1.msra.mxu0 0.0
  %67 = vmatprep.subr.mxu0 0.0
  %68 = vmatpush1.msra.mxu0 0.0
  %69 = vmatprep.subr.mxu0 0.0
  %70 = vmatpush1.msra.mxu0 0.0
  %71 = vmatprep.subr.mxu0 0.0
  %72 = vmatpush1.msra.mxu0 0.0
  %73 = vmatprep.subr.mxu0 0.0
  %74 = vmatpush1.msra.mxu0 0.0
  %75 = vmatprep.subr.mxu0 0.0
  %76 = vmatpush1.msra.mxu0 0.0
  %77 = vmatprep.subr.mxu0 0.0
  %78 = vmatpush1.msra.mxu0 0.0
  %79 = vmatprep.subr.mxu0 0.0
  %80 = vmatpush1.msra.mxu0 0.0
  %81 = vmatprep.subr.mxu0 0.0
  %82 = vmatpush1.msra.mxu0 0.0
  %83 = vmatprep.subr.mxu0 0.0
  %84 = vmatpush1.msra.mxu0 0.0
  %85 = vmatprep.subr.mxu0 0.0
  %86 = vmatpush1.msra.mxu0 0.0
  %87 = vmatprep.subr.mxu0 0.0
  %88 = vmatpush1.msra.mxu0 0.0
  %89 = vmatprep.subr.mxu0 0.0
  %90 = vmatpush1.msra.mxu0 0.0
  %91 = vmatprep.subr.mxu0 0.0
  %92 = vmatpush1.msra.mxu0 0.0
  %93 = vmatprep.subr.mxu0 0.0
  %94 = vmatpush1.msra.mxu0 0.0
  %95 = vmatprep.subr.mxu0 0.0
  %96 = vmatpush1.msra.mxu0 0.0
  %97 = vmatprep.subr.mxu0 0.0
  %98 = vmatpush1.msra.mxu0 0.0
  %99 = vmatprep.mubr.f32.mxu0 0.0
  %100 = vmatmul.mubr.f32.gmra.mrb[0].mxu0 %v33
  %v101 = vpop.f32.mrb[0].mxu0
  %v102 = vadd.f32 %v30, %v101
  %v103 = vpop.f32.mrb[0].mxu0
  %104 = vdwg.mxu0
  %vm105 = vcmp.gt.f32.partialorder %v102, 0.0
  %v106 = vmul.f32 %v102, 0.01
  %v107 = vsel %vm105, %v102, %v106
  %v108 = vlaneseq
  %v109 = vshrl.u32 %v108, 7
  %v110 = vsub.s32 0, %v109
  %v111 = vrot.slane %v23, %v110
  %vm112 = vcmask 130048
  %v114 = vsel %vm112, %v107, 0
  %116 = vmatprep.subr.mxu0 0.0
  %117 = vmatpush1.msra.mxu0 %v21
  %118 = vmatprep.subr.mxu0 0.0
  %119 = vmatpush1.msra.mxu0 %v22
  %120 = vmatprep.subr.mxu0 0.0
  %121 = vmatpush1.msra.mxu0 0.0
  %122 = vmatprep.subr.mxu0 0.0
  %123 = vmatpush1.msra.mxu0 0.0
  %124 = vmatprep.subr.mxu0 0.0
  %125 = vmatpush1.msra.mxu0 0.0
  %126 = vmatprep.subr.mxu0 0.0
  %127 = vmatpush1.msra.mxu0 0.0
  %128 = vmatprep.subr.mxu0 0.0
  %129 = vmatpush1.msra.mxu0 0.0
  %130 = vmatprep.subr.mxu0 0.0
  %131 = vmatpush1.msra.mxu0 0.0
  %132 = vmatprep.subr.mxu0 0.0
  %133 = vmatpush1.msra.mxu0 0.0
  %134 = vmatprep.subr.mxu0 0.0
  %135 = vmatpush1.msra.mxu0 0.0
  %136 = vmatprep.subr.mxu0 0.0
  %137 = vmatpush1.msra.mxu0 0.0
  %138 = vmatprep.subr.mxu0 0.0
  %139 = vmatpush1.msra.mxu0 0.0
  %140 = vmatprep.subr.mxu0 0.0
  %141 = vmatpush1.msra.mxu0 0.0
  %142 = vmatprep.subr.mxu0 0.0
  %143 = vmatpush1.msra.mxu0 0.0
  %144 = vmatprep.subr.mxu0 0.0
  %145 = vmatpush1.msra.mxu0 0.0
  %146 = vmatprep.subr.mxu0 0.0
  %147 = vmatpush1.msra.mxu0 0.0
  %148 = vmatprep.subr.mxu0 0.0
  %149 = vmatpush1.msra.mxu0 0.0
  %150 = vmatprep.subr.mxu0 0.0
  %151 = vmatpush1.msra.mxu0 0.0
  %152 = vmatprep.subr.mxu0 0.0
  %153 = vmatpush1.msra.mxu0 0.0
  %154 = vmatprep.subr.mxu0 0.0
  %155 = vmatpush1.msra.mxu0 0.0
  %156 = vmatprep.subr.mxu0 0.0
  %157 = vmatpush1.msra.mxu0 0.0
  %158 = vmatprep.subr.mxu0 0.0
  %159 = vmatpush1.msra.mxu0 0.0
  %160 = vmatprep.subr.mxu0 0.0
  %161 = vmatpush1.msra.mxu0 0.0
  %162 = vmatprep.subr.mxu0 0.0
  %163 = vmatpush1.msra.mxu0 0.0
  %164 = vmatprep.subr.mxu0 0.0
  %165 = vmatpush1.msra.mxu0 0.0
  %166 = vmatprep.subr.mxu0 0.0
  %167 = vmatpush1.msra.mxu0 0.0
  %168 = vmatprep.subr.mxu0 0.0
  %169 = vmatpush1.msra.mxu0 0.0
  %170 = vmatprep.subr.mxu0 0.0
  %171 = vmatpush1.msra.mxu0 0.0
  %172 = vmatprep.subr.mxu0 0.0
  %173 = vmatpush1.msra.mxu0 0.0
  %174 = vmatprep.subr.mxu0 0.0
  %175 = vmatpush1.msra.mxu0 0.0
  %176 = vmatprep.subr.mxu0 0.0
  %177 = vmatpush1.msra.mxu0 0.0
  %178 = vmatprep.subr.mxu0 0.0
  %179 = vmatpush1.msra.mxu0 0.0
  %180 = vmatprep.mubr.f32.mxu0 0.0
  %181 = vmatmul.mubr.f32.gmra.mrb[0].mxu0 %v114
  %v182 = vpop.f32.mrb[0].mxu0
  %v183 = vadd.f32 %v111, %v182
  %v184 = vpop.f32.mrb[0].mxu0
  %185 = vdwg.mxu0
  %vm186 = vcmp.gt.f32.partialorder %v183, 0.0
  %v187 = vmul.f32 %v183, 0.01
  %v188 = vsel %vm186, %v183, %v187
  %v189 = vlaneseq
  %v190 = vshrl.u32 %v189, 7
  %v191 = vsub.s32 0, %v190
  %v192 = vrot.slane %v26, %v191
  %v194 = vsel %vm112, %v188, 0
  %196 = vmatprep.subr.mxu0 0.0
  %197 = vmatpush1.msra.mxu0 %v24
  %198 = vmatprep.subr.mxu0 0.0
  %199 = vmatpush1.msra.mxu0 %v25
  %200 = vmatprep.subr.mxu0 0.0
  %201 = vmatpush1.msra.mxu0 0.0
  %202 = vmatprep.subr.mxu0 0.0
  %203 = vmatpush1.msra.mxu0 0.0
  %204 = vmatprep.subr.mxu0 0.0
  %205 = vmatpush1.msra.mxu0 0.0
  %206 = vmatprep.subr.mxu0 0.0
  %207 = vmatpush1.msra.mxu0 0.0
  %208 = vmatprep.subr.mxu0 0.0
  %209 = vmatpush1.msra.mxu0 0.0
  %210 = vmatprep.subr.mxu0 0.0
  %211 = vmatpush1.msra.mxu0 0.0
  %212 = vmatprep.subr.mxu0 0.0
  %213 = vmatpush1.msra.mxu0 0.0
  %214 = vmatprep.subr.mxu0 0.0
  %215 = vmatpush1.msra.mxu0 0.0
  %216 = vmatprep.subr.mxu0 0.0
  %217 = vmatpush1.msra.mxu0 0.0
  %218 = vmatprep.subr.mxu0 0.0
  %219 = vmatpush1.msra.mxu0 0.0
  %220 = vmatprep.subr.mxu0 0.0
  %221 = vmatpush1.msra.mxu0 0.0
  %222 = vmatprep.subr.mxu0 0.0
  %223 = vmatpush1.msra.mxu0 0.0
  %224 = vmatprep.subr.mxu0 0.0
  %225 = vmatpush1.msra.mxu0 0.0
  %226 = vmatprep.subr.mxu0 0.0
  %227 = vmatpush1.msra.mxu0 0.0
  %228 = vmatprep.subr.mxu0 0.0
  %229 = vmatpush1.msra.mxu0 0.0
  %230 = vmatprep.subr.mxu0 0.0
  %231 = vmatpush1.msra.mxu0 0.0
  %232 = vmatprep.subr.mxu0 0.0
  %233 = vmatpush1.msra.mxu0 0.0
  %234 = vmatprep.subr.mxu0 0.0
  %235 = vmatpush1.msra.mxu0 0.0
  %236 = vmatprep.subr.mxu0 0.0
  %237 = vmatpush1.msra.mxu0 0.0
  %238 = vmatprep.subr.mxu0 0.0
  %239 = vmatpush1.msra.mxu0 0.0
  %240 = vmatprep.subr.mxu0 0.0
  %241 = vmatpush1.msra.mxu0 0.0
  %242 = vmatprep.subr.mxu0 0.0
  %243 = vmatpush1.msra.mxu0 0.0
  %244 = vmatprep.subr.mxu0 0.0
  %245 = vmatpush1.msra.mxu0 0.0
  %246 = vmatprep.subr.mxu0 0.0
  %247 = vmatpush1.msra.mxu0 0.0
  %248 = vmatprep.subr.mxu0 0.0
  %249 = vmatpush1.msra.mxu0 0.0
  %250 = vmatprep.subr.mxu0 0.0
  %251 = vmatpush1.msra.mxu0 0.0
  %252 = vmatprep.subr.mxu0 0.0
  %253 = vmatpush1.msra.mxu0 0.0
  %254 = vmatprep.subr.mxu0 0.0
  %255 = vmatpush1.msra.mxu0 0.0
  %256 = vmatprep.subr.mxu0 0.0
  %257 = vmatpush1.msra.mxu0 0.0
  %258 = vmatprep.subr.mxu0 0.0
  %259 = vmatpush1.msra.mxu0 0.0
  %260 = vmatprep.mubr.f32.mxu0 0.0
  %261 = vmatmul.mubr.f32.gmra.mrb[0].mxu0 %v194
  %v262 = vpop.f32.mrb[0].mxu0
  %v263 = vadd.f32 %v192, %v262
  %v264 = vpop.f32.mrb[0].mxu0
  %265 = vdwg.mxu0
  %v266 = vadd.f32 %v263, %v15
  %vm267 = vcmask 31744
  %v268 = vsel %vm267, %v266, -inf
  %269 = vmax.index.xlane.f32.xlu0 %v268
  %v270 = vpop.xlane.xlu0 %269
  %v271 = vlaneseq
  %v272 = vand.u32 %v271, 127
  %vm273 = vcmp.eq.s32.totalorder %v272, %v270
  %v274 = vsel %vm273, 1, 0
  %v275 = vcvt.s32.f32 %v274
  %276 = vst.msk [vmem:[%s3] sm:$0xff] %vm267, %v275
  // Predicated region
  $region14: #{tpu_custom_call.1} parent=0 // pred_check
    _
  $region15: #{tpu_custom_call.1} parent=0 // pred_check_branch
    %278 = sbr.rel (0) target = $region17
  $region16: #{tpu_custom_call.1} parent=0 // pred_region
    _
  $region17: #{tpu_custom_call.1} parent=0 // pred_fallthru
    _
  // Predicated region
  $region18: #{tpu_custom_call.1} parent=0 // pred_check
    _
  $region19: #{tpu_custom_call.1} parent=0 // pred_check_branch
    %280 = sbr.rel (0) target = $region21
  $region20: #{tpu_custom_call.1} parent=0 // pred_region
    _
  $region21: #{tpu_custom_call.1} parent=0 // pred_fallthru
    _

</llo_original>
